<compile_context>
chip_gen: v7x
topology: tpu7x:2x2x1
jax: 0.10.0
libtpu: 0.0.40
codegen_flags: <defaults>
</compile_context>

<pallas_src>
import functools

import jax
import jax.numpy as jnp
from jax.experimental import pallas as pl
from jax.experimental.pallas import tpu as pltpu

_LANES = 128                     # lane (fast) axis width
_SUBLANES = 8                    # f32 sublane granularity
_EPS = 1e-6                      # guard for log args (saturated probs only)
_PALLAS_MIN_ELEMS = 128 * 1024   # below this the fused jnp expression wins


def _weighted_bce(x, t, w1, w0, eps=0.0):
    """loss = -( w1 * t * log(x) + w0 * (1 - t) * log(1 - x) )  (elementwise)."""
    if eps:
        x = jnp.clip(x, eps, 1.0 - eps)
    return -(w1 * t * jnp.log(x) + w0 * (1.0 - t) * jnp.log(1.0 - x))


@functools.lru_cache(maxsize=32)
def _make_kernel(w1_vals, w0_vals, eps):
    """Pallas kernel with the per-study-type weight tables baked in as
    compile-time constants; the only per-element streams are x, t, idx, out."""
    n_types = len(w1_vals)

    def kernel(x_ref, t_ref, idx_ref, o_ref):
        x = x_ref[...].astype(jnp.float32)
        if eps:
            x = jnp.clip(x, eps, 1.0 - eps)
        t = t_ref[...].astype(jnp.float32)
        idx = idx_ref[...].astype(jnp.int32)          # int8 -> int32, VALU slack
        # Per-element weight select: short where-chain over the few study types.
        w1 = jnp.full(x.shape, w1_vals[0], jnp.float32)
        w0 = jnp.full(x.shape, w0_vals[0], jnp.float32)
        for s in range(1, n_types):
            sel = idx == s
            w1 = jnp.where(sel, w1_vals[s], w1)
            w0 = jnp.where(sel, w0_vals[s], w0)
        o_ref[...] = _weighted_bce(x, t, w1, w0)      # eps already applied

    return kernel


def _default_tile_rows():
    # 2048-row f32 blocks (1 MiB / operand) double-buffer within the default
    # scoped VMEM on every generation; v7x's 3.2 TB/s HBM amortizes the
    # ~0.35 us per-grid-step overhead better with 4096-row blocks.
    try:
        kind = jax.devices()[0].device_kind.lower()
    except Exception:  # pragma: no cover
        kind = ""
    return 4096 if "v7" in kind else 2048


def mura_bce_loss(inputs, targets, study_idx, w1_table, w0_table, *,
                  tile_rows=None, min_pallas_elems=_PALLAS_MIN_ELEMS,
                  clip_eps=_EPS, core_parallel=False):
    """Weighted per-sample BCE, PyTorch MuraBCELoss.forward semantics.

    inputs     : probabilities; any shape with targets.size elements
                 (PyTorch `inputs.view_as(targets)`).
    targets    : labels (any shape); the returned loss has this shape.
    study_idx  : per-sample study-type index (int8 preferred -- it is the only
                 extra per-element stream), same element count as targets.
    w1_table / w0_table : per-study-type weights for the current phase, i.e.
                 [W{1,0}[st][phase] for st in study_type_order]; concrete host
                 values (baked into the kernel as constants).
    """
    out_shape = targets.shape
    n = int(targets.size)
    w1_vals = tuple(float(v) for v in w1_table)
    w0_vals = tuple(float(v) for v in w0_table)
    if not w1_vals or len(w1_vals) != len(w0_vals):
        raise ValueError("w1_table / w0_table must be equal-length, non-empty")

    x = jnp.reshape(inputs, (-1,))        # inputs.view_as(targets); free bitcast
    t = jnp.reshape(targets, (-1,))
    idx = jnp.reshape(study_idx, (-1,))

    # Auto-dispatch: tiny or ragged batches -> single fused XLA elementwise pass
    # (a pallas_call is pure launch overhead for realistic MURA batch sizes).
    # TODO(synk): n % 128 != 0 also takes this path; an in-kernel ragged-tail
    # mask on a flat layout would let Pallas cover it without a pad copy.
    if n < max(int(min_pallas_elems), 1) or n % _LANES != 0:
        w1 = jnp.asarray(w1_vals, jnp.float32)[idx.astype(jnp.int32)]
        w0 = jnp.asarray(w0_vals, jnp.float32)[idx.astype(jnp.int32)]
        loss = _weighted_bce(x.astype(jnp.float32), t.astype(jnp.float32),
                             w1, w0, clip_eps)
        return loss.reshape(out_shape)

    # Lane/sublane-dense (rows, 128) view -- a free reshape, no pad, no copy.
    rows = n // _LANES
    req = tile_rows if tile_rows is not None else _default_tile_rows()
    req = max(_SUBLANES, (int(req) // _SUBLANES) * _SUBLANES)
    # min(req, rows) is always a legal block height: it either equals `rows`
    # (full-extent block) or `req` (a multiple of 8).  The last grid step may be
    # a partial block; Pallas masks its writeback, so no output slice is needed.
    blk_rows = min(req, rows)
    grid = (pl.cdiv(rows, blk_rows),)

    x2 = x.reshape(rows, _LANES)
    t2 = t.reshape(rows, _LANES)
    idx2 = idx.reshape(rows, _LANES)

    spec = pl.BlockSpec((blk_rows, _LANES), lambda i: (i, 0))
    # CORE_PARALLEL splits the row grid across v7x's two TensorCores (each has
    # its own DMA path); "arbitrary" is equivalent on single-core v5e/v6e.
    dims = (pltpu.CORE_PARALLEL,) if core_parallel else ("arbitrary",)

    out = pl.pallas_call(
        _make_kernel(w1_vals, w0_vals, float(clip_eps)),
        out_shape=jax.ShapeDtypeStruct((rows, _LANES), jnp.float32),
        grid=grid,
        in_specs=[spec, spec, spec],
        out_specs=spec,
        compiler_params=pltpu.CompilerParams(dimension_semantics=dims),
    )(x2, t2, idx2)

    return out.reshape(out_shape)


class MuraBCELoss:
    """Drop-in analogue of the PyTorch module.

    forward(inputs, targets, phase, study_types): the W1/W0 dict lookup happens
    host-side (exactly as in the original), producing an int8 index stream plus
    tiny per-type weight tables for the kernel.
    """

    def __init__(self, W1, W0, batch_size=None):
        del batch_size                          # kept for signature parity
        self.W1 = W1
        self.W0 = W0
        self.study_type_order = sorted(W1.keys())
        self._type_to_idx = {st: i for i, st in enumerate(self.study_type_order)}

    def __call__(self, inputs, targets, phase, study_types, **kwargs):
        return self.forward(inputs, targets, phase, study_types, **kwargs)

    def forward(self, inputs, targets, phase, study_types, **kwargs):
        idx = jnp.asarray([self._type_to_idx[st] for st in study_types],
                          dtype=jnp.int8)
        w1 = [self.W1[st][phase] for st in self.study_type_order]
        w0 = [self.W0[st][phase] for st in self.study_type_order]
        return mura_bce_loss(inputs, targets, idx, w1, w0, **kwargs)


if __name__ == "__main__":
    key = jax.random.PRNGKey(0)

    # Synthetic MURA-style weight tables (deterministic, built in-script).
    study_type_names = ["XR_ELBOW", "XR_FINGER", "XR_FOREARM", "XR_HAND",
                        "XR_HUMERUS", "XR_SHOULDER", "XR_WRIST"]
    W1 = {st: {"train": 0.55 + 0.03 * i, "valid": 0.50 + 0.03 * i}
          for i, st in enumerate(study_type_names)}
    W0 = {st: {"train": 0.45 - 0.03 * i, "valid": 0.50 - 0.03 * i}
          for i, st in enumerate(study_type_names)}
    phase = "train"
    order = sorted(study_type_names)
    w1_vec = [W1[st][phase] for st in order]
    w0_vec = [W0[st][phase] for st in order]
    n_types = len(order)

    loss_mod = MuraBCELoss(W1, W0, batch_size=8)

    def make_batch(n, case_key):
        k1, k2, k3 = jax.random.split(case_key, 3)
        inputs = jax.nn.sigmoid(jax.random.normal(k1, (n, 1), jnp.float32))
        targets = (jax.random.uniform(k2, (n,)) > 0.5).astype(jnp.float32)
        idx = jax.random.randint(k3, (n,), 0, n_types, jnp.int32).astype(jnp.int8)
        return inputs, targets, idx

    def reference(inputs, targets, idx):
        w1 = jnp.asarray(w1_vec, jnp.float32)[idx.astype(jnp.int32)]
        w0 = jnp.asarray(w0_vec, jnp.float32)[idx.astype(jnp.int32)]
        x = inputs.reshape(targets.shape).astype(jnp.float32)
        return -(w1 * targets * jnp.log(x)
                 + w0 * (1.0 - targets) * jnp.log(1.0 - x))

    def check(loss, inputs, targets, idx):
        loss = jax.block_until_ready(loss)
        ref = reference(inputs, targets, idx)
        assert loss.shape == targets.shape, (loss.shape, targets.shape)
        err = float(jnp.max(jnp.abs(loss - ref)))
        assert jnp.allclose(loss, ref, atol=1e-6, rtol=1e-6), err

    keys = jax.random.split(key, 4)

    # Case 1: realistic tiny MURA batch (8 studies) via the module-style class;
    # auto-dispatch uses the fused jnp path (no pallas launch overhead).
    study_types = [study_type_names[i % len(study_type_names)] for i in range(8)]
    idx1 = jnp.asarray([order.index(st) for st in study_types], jnp.int8)
    k1a, k1b = jax.random.split(keys[0])
    inputs1 = jax.nn.sigmoid(jax.random.normal(k1a, (8, 1), jnp.float32))
    targets1 = (jax.random.uniform(k1b, (8,)) > 0.5).astype(jnp.float32)
    loss1 = loss_mod(inputs1, targets1, phase, study_types)
    check(loss1, inputs1, targets1, idx1)

    # Case 2: lane-aligned batch, multi-step pipelined grid with a partial last
    # block (rows=96, tile 64 -> one full + one partial block).  Small tile /
    # threshold overrides keep the demo tiny while exercising the Pallas path.
    n2 = 96 * _LANES
    inputs2, targets2, idx2 = make_batch(n2, keys[1])
    loss2 = mura_bce_loss(inputs2, targets2, idx2, w1_vec, w0_vec,
                          tile_rows=64, min_pallas_elems=1024)
    check(loss2, inputs2, targets2, idx2)

    # Case 3: lane-aligned batch, single full-extent block (rows <= tile_rows).
    n3 = 64 * _LANES
    inputs3, targets3, idx3 = make_batch(n3, keys[2])
    loss3 = mura_bce_loss(inputs3, targets3, idx3, w1_vec, w0_vec,
                          min_pallas_elems=1024)
    check(loss3, inputs3, targets3, idx3)

    # Case 4: ragged batch (n % 128 != 0) -> fused jnp fallback, still correct.
    n4 = 3000
    inputs4, targets4, idx4 = make_batch(n4, keys[3])
    loss4 = mura_bce_loss(inputs4, targets4, idx4, w1_vec, w0_vec)
    check(loss4, inputs4, targets4, idx4)

    print("KERNEL_OK")
</pallas_src>

<mosaic_0001>
module attributes {stable_mosaic.version = 11 : i64} {
  func.func @kernel(%arg0: i32, %arg1: memref<64x128xf32, #tpu.memory_space<vmem>>, %arg2: memref<64x128xf32, #tpu.memory_space<vmem>>, %arg3: memref<64x128xi8, #tpu.memory_space<vmem>>, %arg4: memref<64x128xf32, #tpu.memory_space<vmem>>) attributes {dimension_semantics = [#tpu.dimension_semantics<arbitrary>], iteration_bounds = array<i64: 2>, scalar_prefetch = 0 : i64, scratch_operands = 0 : i64, tpu.core_type = #tpu.core_type<tc>, window_params = [{transform_indices = @transform_0, window_bounds = array<i64: 64, 128>}, {transform_indices = @transform_1, window_bounds = array<i64: 64, 128>}, {transform_indices = @transform_2, window_bounds = array<i64: 64, 128>}, {transform_indices = @transform_3, window_bounds = array<i64: 64, 128>}]} {
    %c0 = arith.constant 0 : index
    %c0_0 = arith.constant 0 : index
    %0 = vector.load %arg1[%c0, %c0_0] : memref<64x128xf32, #tpu.memory_space<vmem>>, vector<64x128xf32>
    %cst = arith.constant 9.99999997E-7 : f32
    %cst_1 = arith.constant 0.999998986 : f32
    %1 = vector.broadcast %cst : f32 to vector<64x128xf32>
    %2 = arith.maximumf %1, %0 : vector<64x128xf32>
    %3 = vector.broadcast %cst_1 : f32 to vector<64x128xf32>
    %4 = arith.minimumf %3, %2 : vector<64x128xf32>
    %c0_2 = arith.constant 0 : index
    %c0_3 = arith.constant 0 : index
    %5 = vector.load %arg2[%c0_2, %c0_3] : memref<64x128xf32, #tpu.memory_space<vmem>>, vector<64x128xf32>
    %c0_4 = arith.constant 0 : index
    %c0_5 = arith.constant 0 : index
    %6 = vector.load %arg3[%c0_4, %c0_5] : memref<64x128xi8, #tpu.memory_space<vmem>>, vector<64x128xi8>
    %7 = arith.extsi %6 : vector<64x128xi8> to vector<64x128xi32>
    %cst_6 = arith.constant 5.500000e-01 : f32
    %8 = vector.broadcast %cst_6 : f32 to vector<64x128xf32>
    %cst_7 = arith.constant 4.500000e-01 : f32
    %9 = vector.broadcast %cst_7 : f32 to vector<64x128xf32>
    %c1_i32 = arith.constant 1 : i32
    %10 = vector.broadcast %c1_i32 : i32 to vector<64x128xi32>
    %11 = arith.cmpi eq, %7, %10 : vector<64x128xi32>
    %cst_8 = arith.constant 5.800000e-01 : f32
    %12 = vector.broadcast %cst_8 : f32 to vector<64x128xf32>
    %13 = arith.select %11, %12, %8 : vector<64x128xi1>, vector<64x128xf32>
    %cst_9 = arith.constant 4.200000e-01 : f32
    %14 = vector.broadcast %cst_9 : f32 to vector<64x128xf32>
    %15 = arith.select %11, %14, %9 : vector<64x128xi1>, vector<64x128xf32>
    %c2_i32 = arith.constant 2 : i32
    %16 = vector.broadcast %c2_i32 : i32 to vector<64x128xi32>
    %17 = arith.cmpi eq, %7, %16 : vector<64x128xi32>
    %cst_10 = arith.constant 6.100000e-01 : f32
    %18 = vector.broadcast %cst_10 : f32 to vector<64x128xf32>
    %19 = arith.select %17, %18, %13 : vector<64x128xi1>, vector<64x128xf32>
    %cst_11 = arith.constant 3.900000e-01 : f32
    %20 = vector.broadcast %cst_11 : f32 to vector<64x128xf32>
    %21 = arith.select %17, %20, %15 : vector<64x128xi1>, vector<64x128xf32>
    %c3_i32 = arith.constant 3 : i32
    %22 = vector.broadcast %c3_i32 : i32 to vector<64x128xi32>
    %23 = arith.cmpi eq, %7, %22 : vector<64x128xi32>
    %cst_12 = arith.constant 6.400000e-01 : f32
    %24 = vector.broadcast %cst_12 : f32 to vector<64x128xf32>
    %25 = arith.select %23, %24, %19 : vector<64x128xi1>, vector<64x128xf32>
    %cst_13 = arith.constant 3.600000e-01 : f32
    %26 = vector.broadcast %cst_13 : f32 to vector<64x128xf32>
    %27 = arith.select %23, %26, %21 : vector<64x128xi1>, vector<64x128xf32>
    %c4_i32 = arith.constant 4 : i32
    %28 = vector.broadcast %c4_i32 : i32 to vector<64x128xi32>
    %29 = arith.cmpi eq, %7, %28 : vector<64x128xi32>
    %cst_14 = arith.constant 6.700000e-01 : f32
    %30 = vector.broadcast %cst_14 : f32 to vector<64x128xf32>
    %31 = arith.select %29, %30, %25 : vector<64x128xi1>, vector<64x128xf32>
    %cst_15 = arith.constant 3.300000e-01 : f32
    %32 = vector.broadcast %cst_15 : f32 to vector<64x128xf32>
    %33 = arith.select %29, %32, %27 : vector<64x128xi1>, vector<64x128xf32>
    %c5_i32 = arith.constant 5 : i32
    %34 = vector.broadcast %c5_i32 : i32 to vector<64x128xi32>
    %35 = arith.cmpi eq, %7, %34 : vector<64x128xi32>
    %cst_16 = arith.constant 0.699999988 : f32
    %36 = vector.broadcast %cst_16 : f32 to vector<64x128xf32>
    %37 = arith.select %35, %36, %31 : vector<64x128xi1>, vector<64x128xf32>
    %cst_17 = arith.constant 3.000000e-01 : f32
    %38 = vector.broadcast %cst_17 : f32 to vector<64x128xf32>
    %39 = arith.select %35, %38, %33 : vector<64x128xi1>, vector<64x128xf32>
    %c6_i32 = arith.constant 6 : i32
    %40 = vector.broadcast %c6_i32 : i32 to vector<64x128xi32>
    %41 = arith.cmpi eq, %7, %40 : vector<64x128xi32>
    %cst_18 = arith.constant 7.300000e-01 : f32
    %42 = vector.broadcast %cst_18 : f32 to vector<64x128xf32>
    %43 = arith.select %41, %42, %37 : vector<64x128xi1>, vector<64x128xf32>
    %cst_19 = arith.constant 2.700000e-01 : f32
    %44 = vector.broadcast %cst_19 : f32 to vector<64x128xf32>
    %45 = arith.select %41, %44, %39 : vector<64x128xi1>, vector<64x128xf32>
    %46 = arith.mulf %43, %5 : vector<64x128xf32>
    %47 = math.log %4 : vector<64x128xf32>
    %48 = arith.mulf %46, %47 : vector<64x128xf32>
    %cst_20 = arith.constant 1.000000e+00 : f32
    %49 = vector.broadcast %cst_20 : f32 to vector<64x128xf32>
    %50 = arith.subf %49, %5 : vector<64x128xf32>
    %51 = arith.mulf %45, %50 : vector<64x128xf32>
    %cst_21 = arith.constant 1.000000e+00 : f32
    %52 = vector.broadcast %cst_21 : f32 to vector<64x128xf32>
    %53 = arith.subf %52, %4 : vector<64x128xf32>
    %54 = math.log %53 : vector<64x128xf32>
    %55 = arith.mulf %51, %54 : vector<64x128xf32>
    %56 = arith.addf %48, %55 : vector<64x128xf32>
    %cst_22 = arith.constant 0.000000e+00 : f32
    %57 = vector.broadcast %cst_22 : f32 to vector<64x128xf32>
    %58 = arith.subf %57, %56 : vector<64x128xf32>
    %c0_23 = arith.constant 0 : index
    %c0_24 = arith.constant 0 : index
    %59 = vector.load %arg4[%c0_23, %c0_24] : memref<64x128xf32, #tpu.memory_space<vmem>>, vector<64x128xf32>
    tpu.vector_store %arg4[%c0_23, %c0_24], %58 {strides = array<i32>} : memref<64x128xf32, #tpu.memory_space<vmem>>, vector<64x128xf32>,
    return
  }
  func.func @transform_0(%arg0: i32) -> (i32, i32) {
    %c0_i32 = arith.constant 0 : i32
    %c0_i32_0 = arith.constant 0 : i32
    return %arg0, %c0_i32 : i32, i32
  }
  func.func @transform_1(%arg0: i32) -> (i32, i32) {
    %c0_i32 = arith.constant 0 : i32
    %c0_i32_0 = arith.constant 0 : i32
    return %arg0, %c0_i32 : i32, i32
  }
  func.func @transform_2(%arg0: i32) -> (i32, i32) {
    %c0_i32 = arith.constant 0 : i32
    %c0_i32_0 = arith.constant 0 : i32
    return %arg0, %c0_i32 : i32, i32
  }
  func.func @transform_3(%arg0: i32) -> (i32, i32) {
    %c0_i32 = arith.constant 0 : i32
    %c0_i32_0 = arith.constant 0 : i32
    return %arg0, %c0_i32 : i32, i32
  }
}

</mosaic_0001>

<llo_original>
// kernel: tpu_custom_call.1
$region0: #{tpu_custom_call.1}
  #allocation0 [shape = 'u32[]', space=smem, size = 0x4, offset = 0x4, fixed_abs, tag = 'smem constant byte address 0x4 - core index']
  #allocation1 [shape = 'u32[144,128]{1,0:T(1,128)}', space=vmem, size = 0x12000, scoped, tag = 'internal scratch']
  %s0 = inlined_call_operand.hbm [shape: f32[96,128], index: 0, kind: input, shape index: {}]
  %s1 = inlined_call_operand.hbm [shape: f32[96,128], index: 1, kind: input, shape index: {}]
  %s2 = inlined_call_operand.hbm [shape: s8[96,128], index: 2, kind: input, shape index: {}]
  %s3 = inlined_call_operand.hbm [shape: f32[96,128], index: 3, kind: output, shape index: {}]
  %s4 = sld [smem:[#allocation0]]
  $region57: #{tpu_custom_call.1} parent=0
    _
  %s6 = ssub.s32 1, %s4
  %s7 = scalar_select 0, %s6, %s4
  $region1: #{tpu_custom_call.1} parent=0
    #allocation2 [shape = 'u8[65536]{0}', space=vmem, size = 0x10000, scoped, tag = 'input window, operand 0']
    #allocation3 [shape = 's32[2]{0}', space=sflag, size = 0x8, scoped, tag = 'scoped memory for tpu_custom_call.1']
    #allocation4 [shape = 's32[2]{0}', space=sflag, size = 0x8, scoped, tag = 'scoped memory for tpu_custom_call.1']
    #allocation5 [shape = 'u8[65536]{0}', space=vmem, size = 0x10000, scoped, tag = 'input window, operand 1']
    #allocation6 [shape = 's32[2]{0}', space=sflag, size = 0x8, scoped, tag = 'scoped memory for tpu_custom_call.1']
    #allocation7 [shape = 'u8[16384]{0}', space=vmem, size = 0x4000, scoped, tag = 'input window, operand 2']
    #allocation8 [shape = 'u8[65536]{0}', space=vmem, size = 0x10000, scoped, tag = 'output window, operand 0']
    %8 = vsyncpa [#allocation3], 0
    %s9 = scalar_lea.sflag [#allocation3], 1
    %10 = vsyncpa %s9, 0
    %11 = vsyncpa [#allocation6], 0
    %s12 = scalar_lea.sflag [#allocation6], 1
    %13 = vsyncpa %s12, 0
    %14 = vsyncpa [#allocation4], 0
    %s15 = scalar_lea.sflag [#allocation4], 1
    %16 = vsyncpa %s15, 0
    loop: start=0, step=1, limit=4
    $region2: #{tpu_custom_call.1} parent=1 // loop_pre_header
      _
    $region3: #{tpu_custom_call.1} parent=1 // loop_header
      %s18 = sphi 0, %s22
      %p19 = scmp.ge.s32.totalorder %s18, 4
      %s28 = sphi 0, %s30
      %s31 = sphi 0, %s28
      %s32 = sphi 0, %s31
      %s48 = sphi 0, %s32
      %s54 = sphi 0, %s56
      %s57 = sphi 0, %s54
      %s58 = sphi 0, %s57
      %s74 = sphi 0, %s58
      %s80 = sphi 0, %s82
      %s83 = sphi 0, %s80
      %s84 = sphi 0, %s83
      %s100 = sphi 0, %s84
      %s106 = sphi 0, %s108
      %s109 = sphi 0, %s106
      %s110 = sphi 0, %s109
      %s126 = sphi 0, %s110
    $region4: #{tpu_custom_call.1} parent=1 // loop_header_branch
      %21 = sbr.rel (%p19) target = $region8
    $region5: #{tpu_custom_call.1} parent=1 // loop_body
      %s23 = ssub.s32 %s18, 1
      %s24 = ssub.s32 %s18, 2
      %s25 = sadd.s32 %s18, 1
      %s26 = ssub.s32 %s18, %s25
      %p27 = scmp.eq.s32.totalorder %s26, 0
      %s29 = sadd.s32 %s28, 1
      %s30 = scalar_select %p27, %s28, %s29
      %p33 = pneg %p27
      %p34 = scmp.eq.s32.totalorder %s18, 1
      %p35 = por %p33, %p34
      %p36 = scmp.ne.s32.totalorder %s28, %s31
      %p37 = scmp.eq.s32.totalorder %s18, 0
      %p38 = por %p36, %p37
      %p39 = scmp.ne.s32.totalorder %s28, %s31
      %p40 = scmp.eq.s32.totalorder %s23, 1
      %p41 = por %p39, %p40
      %p42 = scmp.ne.s32.totalorder %s31, %s32
      %p43 = scmp.eq.s32.totalorder %s23, 0
      %p44 = por %p42, %p43
      %p45 = scmp.ne.s32.totalorder %s31, %s32
      %p46 = scmp.eq.s32.totalorder %s24, 1
      %p47 = por %p45, %p46
      %p49 = scmp.ne.s32.totalorder %s32, %s48
      %p50 = scmp.eq.s32.totalorder %s24, 0
      %p51 = por %p49, %p50
      %s52 = ssub.s32 %s18, %s25
      %p53 = scmp.eq.s32.totalorder %s52, 0
      %s55 = sadd.s32 %s54, 1
      %s56 = scalar_select %p53, %s54, %s55
      %p59 = pneg %p53
      %p60 = scmp.eq.s32.totalorder %s18, 1
      %p61 = por %p59, %p60
      %p62 = scmp.ne.s32.totalorder %s54, %s57
      %p63 = scmp.eq.s32.totalorder %s18, 0
      %p64 = por %p62, %p63
      %p65 = scmp.ne.s32.totalorder %s54, %s57
      %p66 = scmp.eq.s32.totalorder %s23, 1
      %p67 = por %p65, %p66
      %p68 = scmp.ne.s32.totalorder %s57, %s58
      %p69 = scmp.eq.s32.totalorder %s23, 0
      %p70 = por %p68, %p69
      %p71 = scmp.ne.s32.totalorder %s57, %s58
      %p72 = scmp.eq.s32.totalorder %s24, 1
      %p73 = por %p71, %p72
      %p75 = scmp.ne.s32.totalorder %s58, %s74
      %p76 = scmp.eq.s32.totalorder %s24, 0
      %p77 = por %p75, %p76
      %s78 = ssub.s32 %s18, %s25
      %p79 = scmp.eq.s32.totalorder %s78, 0
      %s81 = sadd.s32 %s80, 1
      %s82 = scalar_select %p79, %s80, %s81
      %p85 = pneg %p79
      %p86 = scmp.eq.s32.totalorder %s18, 1
      %p87 = por %p85, %p86
      %p88 = scmp.ne.s32.totalorder %s80, %s83
      %p89 = scmp.eq.s32.totalorder %s18, 0
      %p90 = por %p88, %p89
      %p91 = scmp.ne.s32.totalorder %s80, %s83
      %p92 = scmp.eq.s32.totalorder %s23, 1
      %p93 = por %p91, %p92
      %p94 = scmp.ne.s32.totalorder %s83, %s84
      %p95 = scmp.eq.s32.totalorder %s23, 0
      %p96 = por %p94, %p95
      %p97 = scmp.ne.s32.totalorder %s83, %s84
      %p98 = scmp.eq.s32.totalorder %s24, 1
      %p99 = por %p97, %p98
      %p101 = scmp.ne.s32.totalorder %s84, %s100
      %p102 = scmp.eq.s32.totalorder %s24, 0
      %p103 = por %p101, %p102
      %s104 = ssub.s32 %s18, %s25
      %p105 = scmp.eq.s32.totalorder %s104, 0
      %s107 = sadd.s32 %s106, 1
      %s108 = scalar_select %p105, %s106, %s107
      %p111 = pneg %p105
      %p112 = scmp.eq.s32.totalorder %s18, 1
      %p113 = por %p111, %p112
      %p114 = scmp.ne.s32.totalorder %s106, %s109
      %p115 = scmp.eq.s32.totalorder %s18, 0
      %p116 = por %p114, %p115
      %p117 = scmp.ne.s32.totalorder %s106, %s109
      %p118 = scmp.eq.s32.totalorder %s23, 1
      %p119 = por %p117, %p118
      %p120 = scmp.ne.s32.totalorder %s109, %s110
      %p121 = scmp.eq.s32.totalorder %s23, 0
      %p122 = por %p120, %p121
      %p123 = scmp.ne.s32.totalorder %s109, %s110
      %p124 = scmp.eq.s32.totalorder %s24, 1
      %p125 = por %p123, %p124
      %p127 = scmp.ne.s32.totalorder %s110, %s126
      %p128 = scmp.eq.s32.totalorder %s24, 0
      %p129 = por %p127, %p128
      %p130 = scmp.le.s32.totalorder 1, %s18
      %p131 = scmp.lt.s32.totalorder %s18, 3
      %p132 = pnand %p130, %p131
      %p133 = pneg %p132
      // Predicated region
      $region9: #{tpu_custom_call.1} parent=5 // pred_check
        _
      $region10: #{tpu_custom_call.1} parent=5 // pred_check_branch
        %135 = sbr.rel (%p132) target = $region12
      $region11: #{tpu_custom_call.1} parent=5 // pred_region
        %s136 = ssub.s32 %s18, 1
      $region12: #{tpu_custom_call.1} parent=5 // pred_fallthru
        _
      %p137 = scmp.lt.s32.totalorder %s18, 2
      // Predicated region
      $region13: #{tpu_custom_call.1} parent=5 // pred_check
        %p138 = pneg %p137
      $region14: #{tpu_custom_call.1} parent=5 // pred_check_branch
        %140 = sbr.rel (%p138) target = $region16
      $region15: #{tpu_custom_call.1} parent=5 // pred_region
        // Predicated region
        $region17: #{tpu_custom_call.1} parent=15 // pred_check
          %p141 = pneg %p38
        $region18: #{tpu_custom_call.1} parent=15 // pred_check_branch
          %143 = sbr.rel (%p141) target = $region20
        $region19: #{tpu_custom_call.1} parent=15 // pred_region
          %s144 = sand.u32 %s28, 1
          %s145 = scalar_lea.sflag [#allocation3], %s144
          %s146 = sand.u32 %s28, 1
          %s147 = smul.addr %s146, 64
          %s148 = scalar_lea.vmem [#allocation2], %s147
          %s149 = smul.u32 8, %s18
          %s150 = ssub.s32 12, %s149
          %p151 = scmp.lt.s32.totalorder %s150, 8
          %s152 = scalar_select %p151, %s150, 8
          %s153 = smul.u32 128, %s152
          %s155 = ssub.s32 1024, %s153
          %156 = vsyncadd %s145, %s155
          %p157 = scmp.ne.s32.totalorder 0, %s153
          %s158 = smul.addr %s149, 128
          %s159 = scalar_lea.hbm %s0, %s158
          %s160 = smul.u32 8, %s152
          %s161 = sshll.u32 %s148, 4
          %s162 = int_to_ptr.vmem [resolvable:$true] %s161
          %s163 = sshll.u32 %s160, 4
          %167 = dma.hbm_to_vmem [thread:$0]  (%p157), %s159, %s163, %s162, %s145, 128, 128, 8
        $region20: #{tpu_custom_call.1} parent=15 // pred_fallthru
          _
        // Predicated region
        $region21: #{tpu_custom_call.1} parent=15 // pred_check
          %p168 = pneg %p64
        $region22: #{tpu_custom_call.1} parent=15 // pred_check_branch
          %170 = sbr.rel (%p168) target = $region24
        $region23: #{tpu_custom_call.1} parent=15 // pred_region
          %s171 = sand.u32 %s18, 1
          %s172 = scalar_lea.sflag [#allocation6], %s171
          %s173 = sand.u32 %s54, 1
          %s174 = smul.addr %s173, 64
          %s175 = scalar_lea.vmem [#allocation5], %s174
          %s176 = smul.u32 8, %s18
          %s177 = ssub.s32 12, %s176
          %p178 = scmp.lt.s32.totalorder %s177, 8
          %s179 = scalar_select %p178, %s177, 8
          %s180 = smul.u32 128, %s179
          %s182 = ssub.s32 1024, %s180
          %183 = vsyncadd %s172, %s182
          %p184 = scmp.ne.s32.totalorder 0, %s180
          %s185 = smul.addr %s176, 128
          %s186 = scalar_lea.hbm %s1, %s185
          %s187 = smul.u32 8, %s179
          %s188 = sshll.u32 %s175, 4
          %s189 = int_to_ptr.vmem [resolvable:$true] %s188
          %s190 = sshll.u32 %s187, 4
          %194 = dma.hbm_to_vmem [thread:$0]  (%p184), %s186, %s190, %s189, %s172, 128, 128, 8
        $region24: #{tpu_custom_call.1} parent=15 // pred_fallthru
          _
        // Predicated region
        $region25: #{tpu_custom_call.1} parent=15 // pred_check
          %p195 = pneg %p90
        $region26: #{tpu_custom_call.1} parent=15 // pred_check_branch
          %197 = sbr.rel (%p195) target = $region28
        $region27: #{tpu_custom_call.1} parent=15 // pred_region
          %s198 = sand.u32 %s18, 1
          %s199 = scalar_lea.sflag [#allocation6], %s198
          %s200 = sand.u32 %s80, 1
          %s201 = smul.addr %s200, 16
          %s202 = scalar_lea.vmem [#allocation7], %s201
          %s203 = smul.u32 2, %s18
          %s204 = ssub.s32 3, %s203
          %p205 = scmp.lt.s32.totalorder %s204, 2
          %s206 = scalar_select %p205, %s204, 2
          %s207 = smul.u32 128, %s206
          %s209 = ssub.s32 256, %s207
          %210 = vsyncadd %s199, %s209
          %p211 = scmp.ne.s32.totalorder 0, %s207
          %s212 = smul.addr %s203, 128
          %s213 = scalar_lea.hbm %s2, %s212
          %s214 = smul.u32 8, %s206
          %s215 = sshll.u32 %s202, 4
          %s216 = int_to_ptr.vmem [resolvable:$true] %s215
          %s217 = sshll.u32 %s214, 4
          %221 = dma.hbm_to_vmem [thread:$0]  (%p211), %s213, %s217, %s216, %s199, 128, 128, 8
        $region28: #{tpu_custom_call.1} parent=15 // pred_fallthru
          _
      $region16: #{tpu_custom_call.1} parent=5 // pred_fallthru
        _
      %p222 = scmp.le.s32.totalorder 1, %s18
      %p223 = scmp.lt.s32.totalorder %s18, 3
      %p224 = pnand %p222, %p223
      %p225 = pneg %p224
      // Predicated region
      $region29: #{tpu_custom_call.1} parent=5 // pred_check
        _
      $region30: #{tpu_custom_call.1} parent=5 // pred_check_branch
        %227 = sbr.rel (%p224) target = $region32
      $region31: #{tpu_custom_call.1} parent=5 // pred_region
        %s228 = ssub.s32 %s18, 1
        %s229 = sand.u32 %s31, 1
        %s230 = scalar_lea.sflag [#allocation3], %s229
        %s231 = sand.u32 %s31, 1
        %s232 = smul.addr %s231, 64
        %s233 = scalar_lea.vmem [#allocation2], %s232
        // Predicated region
        $region33: #{tpu_custom_call.1} parent=31 // pred_check
          %p234 = pneg %p44
        $region34: #{tpu_custom_call.1} parent=31 // pred_check_branch
          %236 = sbr.rel (%p234) target = $region36
        $region35: #{tpu_custom_call.1} parent=31 // pred_region
          %237 = dma.done %s230, 1024
        $region36: #{tpu_custom_call.1} parent=31 // pred_fallthru
          _
        %s238 = sand.u32 %s23, 1
        %s239 = scalar_lea.sflag [#allocation6], %s238
        %s240 = sand.u32 %s57, 1
        %s241 = smul.addr %s240, 64
        %s242 = scalar_lea.vmem [#allocation5], %s241
        // Predicated region
        $region37: #{tpu_custom_call.1} parent=31 // pred_check
          %p243 = pneg %p70
        $region38: #{tpu_custom_call.1} parent=31 // pred_check_branch
          %245 = sbr.rel (%p243) target = $region40
        $region39: #{tpu_custom_call.1} parent=31 // pred_region
          %246 = dma.done %s239, 1024
        $region40: #{tpu_custom_call.1} parent=31 // pred_fallthru
          _
        %s247 = sand.u32 %s23, 1
        %s248 = scalar_lea.sflag [#allocation6], %s247
        %s249 = sand.u32 %s83, 1
        %s250 = smul.addr %s249, 16
        %s251 = scalar_lea.vmem [#allocation7], %s250
        // Predicated region
        $region41: #{tpu_custom_call.1} parent=31 // pred_check
          %p252 = pneg %p96
        $region42: #{tpu_custom_call.1} parent=31 // pred_check_branch
          %254 = sbr.rel (%p252) target = $region44
        $region43: #{tpu_custom_call.1} parent=31 // pred_region
          %255 = dma.done %s248, 256
        $region44: #{tpu_custom_call.1} parent=31 // pred_fallthru
          _
        %s256 = sand.u32 %s31, 1
        %s257 = scalar_lea.sflag [#allocation3], %s256
        %s258 = sand.u32 %s31, 1
        %s259 = smul.addr %s258, 64
        %s260 = scalar_lea.vmem [#allocation2], %s259
        %p261 = pneg %p44
        %p262 = pneg %p41
        %s263 = sand.u32 %s23, 1
        %s264 = scalar_lea.sflag [#allocation6], %s263
        %s265 = sand.u32 %s57, 1
        %s266 = smul.addr %s265, 64
        %s267 = scalar_lea.vmem [#allocation5], %s266
        %p268 = pneg %p70
        %p269 = pneg %p67
        %s270 = sand.u32 %s23, 1
        %s271 = scalar_lea.sflag [#allocation6], %s270
        %s272 = sand.u32 %s83, 1
        %s273 = smul.addr %s272, 16
        %s274 = scalar_lea.vmem [#allocation7], %s273
        %p275 = pneg %p96
        %p276 = pneg %p93
        %p277 = pneg %p122
        %p278 = pneg %p119
        %s279 = sand.u32 %s109, 1
        %s280 = scalar_lea.sflag [#allocation4], %s279
        %s281 = sand.u32 %s109, 1
        %s282 = smul.addr %s281, 64
        %s283 = scalar_lea.vmem [#allocation8], %s282
        %s284 = smul.u32 8, %s23
        %s285 = ssub.s32 12, %s284
        %p286 = scmp.lt.s32.totalorder %s285, 8
        %s287 = scalar_select %p286, %s285, 8
        %s288 = smul.u32 128, %s287
        %s289 = smul.u32 8, %s23
        %s290 = ssub.s32 12, %s289
        %p291 = scmp.lt.s32.totalorder %s290, 8
        %s292 = scalar_select %p291, %s290, 8
        %s293 = smul.u32 128, %s292
        %s294 = smul.u32 2, %s23
        %s295 = ssub.s32 3, %s294
        %p296 = scmp.lt.s32.totalorder %s295, 2
        %s297 = scalar_select %p296, %s295, 2
        %s298 = smul.u32 128, %s297
        %s299 = smul.u32 8, %s23
        %s300 = ssub.s32 12, %s299
        %p301 = scmp.lt.s32.totalorder %s300, 8
        %s302 = scalar_select %p301, %s300, 8
        %s303 = smul.u32 128, %s302
        %v304 = vld [vmem:[%s233] sm:$0xff]
        %v305 = vld [vmem:[%s233 + $0x8] sm:$0xff]
        %v306 = vld [vmem:[%s233 + $0x10] sm:$0xff]
        %v307 = vld [vmem:[%s233 + $0x18] sm:$0xff]
        %v308 = vld [vmem:[%s233 + $0x20] sm:$0xff]
        %v309 = vld [vmem:[%s233 + $0x28] sm:$0xff]
        %v310 = vld [vmem:[%s233 + $0x30] sm:$0xff]
        %v311 = vld [vmem:[%s233 + $0x38] sm:$0xff]
        %v312 = vmax.f32 %v304, 1e-06
        %v313 = vmax.f32 %v305, 1e-06
        %v314 = vmax.f32 %v306, 1e-06
        %v315 = vmax.f32 %v307, 1e-06
        %v316 = vmax.f32 %v308, 1e-06
        %v317 = vmax.f32 %v309, 1e-06
        %v318 = vmax.f32 %v310, 1e-06
        %v319 = vmax.f32 %v311, 1e-06
        %v320 = vmin.f32 %v312, 0.999999
        %v321 = vmin.f32 %v313, 0.999999
        %v322 = vmin.f32 %v314, 0.999999
        %v323 = vmin.f32 %v315, 0.999999
        %v324 = vmin.f32 %v316, 0.999999
        %v325 = vmin.f32 %v317, 0.999999
        %v326 = vmin.f32 %v318, 0.999999
        %v327 = vmin.f32 %v319, 0.999999
        %v328 = vld [vmem:[%s242] sm:$0xff]
        %v329 = vld [vmem:[%s242 + $0x8] sm:$0xff]
        %v330 = vld [vmem:[%s242 + $0x10] sm:$0xff]
        %v331 = vld [vmem:[%s242 + $0x18] sm:$0xff]
        %v332 = vld [vmem:[%s242 + $0x20] sm:$0xff]
        %v333 = vld [vmem:[%s242 + $0x28] sm:$0xff]
        %v334 = vld [vmem:[%s242 + $0x30] sm:$0xff]
        %v335 = vld [vmem:[%s242 + $0x38] sm:$0xff]
        %v336 = vld [vmem:[%s251] sm:$0xff]
        %v337 = vld [vmem:[%s251 + $0x8] sm:$0xff]
        %v338 = vunpack.c.0.s8 %v336
        %v339 = vunpack.c.1.s8 %v336
        %v340 = vunpack.c.2.s8 %v336
        %v341 = vunpack.c.3.s8 %v336
        %v342 = vunpack.c.0.s8 %v337
        %v343 = vunpack.c.1.s8 %v337
        %v344 = vunpack.c.2.s8 %v337
        %v345 = vunpack.c.3.s8 %v337
        %vm346 = vcmp.eq.s32.totalorder %v338, 1
        %vm347 = vcmp.eq.s32.totalorder %v339, 1
        %vm348 = vcmp.eq.s32.totalorder %v340, 1
        %vm349 = vcmp.eq.s32.totalorder %v341, 1
        %vm350 = vcmp.eq.s32.totalorder %v342, 1
        %vm351 = vcmp.eq.s32.totalorder %v343, 1
        %vm352 = vcmp.eq.s32.totalorder %v344, 1
        %vm353 = vcmp.eq.s32.totalorder %v345, 1
        %v354 = vsel %vm346, 0.58, 0.55
        %v355 = vsel %vm347, 0.58, 0.55
        %v356 = vsel %vm348, 0.58, 0.55
        %v357 = vsel %vm349, 0.58, 0.55
        %v358 = vsel %vm350, 0.58, 0.55
        %v359 = vsel %vm351, 0.58, 0.55
        %v360 = vsel %vm352, 0.58, 0.55
        %v361 = vsel %vm353, 0.58, 0.55
        %v362 = vsel %vm346, 0.42, 0.45
        %v363 = vsel %vm347, 0.42, 0.45
        %v364 = vsel %vm348, 0.42, 0.45
        %v365 = vsel %vm349, 0.42, 0.45
        %v366 = vsel %vm350, 0.42, 0.45
        %v367 = vsel %vm351, 0.42, 0.45
        %v368 = vsel %vm352, 0.42, 0.45
        %v369 = vsel %vm353, 0.42, 0.45
        %vm370 = vcmp.eq.s32.totalorder %v338, 2
        %vm371 = vcmp.eq.s32.totalorder %v339, 2
        %vm372 = vcmp.eq.s32.totalorder %v340, 2
        %vm373 = vcmp.eq.s32.totalorder %v341, 2
        %vm374 = vcmp.eq.s32.totalorder %v342, 2
        %vm375 = vcmp.eq.s32.totalorder %v343, 2
        %vm376 = vcmp.eq.s32.totalorder %v344, 2
        %vm377 = vcmp.eq.s32.totalorder %v345, 2
        %v378 = vsel %vm370, 0.61, %v354
        %v379 = vsel %vm371, 0.61, %v355
        %v380 = vsel %vm372, 0.61, %v356
        %v381 = vsel %vm373, 0.61, %v357
        %v382 = vsel %vm374, 0.61, %v358
        %v383 = vsel %vm375, 0.61, %v359
        %v384 = vsel %vm376, 0.61, %v360
        %v385 = vsel %vm377, 0.61, %v361
        %v386 = vsel %vm370, 0.39, %v362
        %v387 = vsel %vm371, 0.39, %v363
        %v388 = vsel %vm372, 0.39, %v364
        %v389 = vsel %vm373, 0.39, %v365
        %v390 = vsel %vm374, 0.39, %v366
        %v391 = vsel %vm375, 0.39, %v367
        %v392 = vsel %vm376, 0.39, %v368
        %v393 = vsel %vm377, 0.39, %v369
        %vm394 = vcmp.eq.s32.totalorder %v338, 3
        %vm395 = vcmp.eq.s32.totalorder %v339, 3
        %vm396 = vcmp.eq.s32.totalorder %v340, 3
        %vm397 = vcmp.eq.s32.totalorder %v341, 3
        %vm398 = vcmp.eq.s32.totalorder %v342, 3
        %vm399 = vcmp.eq.s32.totalorder %v343, 3
        %vm400 = vcmp.eq.s32.totalorder %v344, 3
        %vm401 = vcmp.eq.s32.totalorder %v345, 3
        %v402 = vsel %vm394, 0.64, %v378
        %v403 = vsel %vm395, 0.64, %v379
        %v404 = vsel %vm396, 0.64, %v380
        %v405 = vsel %vm397, 0.64, %v381
        %v406 = vsel %vm398, 0.64, %v382
        %v407 = vsel %vm399, 0.64, %v383
        %v408 = vsel %vm400, 0.64, %v384
        %v409 = vsel %vm401, 0.64, %v385
        %v410 = vsel %vm394, 0.36, %v386
        %v411 = vsel %vm395, 0.36, %v387
        %v412 = vsel %vm396, 0.36, %v388
        %v413 = vsel %vm397, 0.36, %v389
        %v414 = vsel %vm398, 0.36, %v390
        %v415 = vsel %vm399, 0.36, %v391
        %v416 = vsel %vm400, 0.36, %v392
        %v417 = vsel %vm401, 0.36, %v393
        %vm418 = vcmp.eq.s32.totalorder %v338, 4
        %vm419 = vcmp.eq.s32.totalorder %v339, 4
        %vm420 = vcmp.eq.s32.totalorder %v340, 4
        %vm421 = vcmp.eq.s32.totalorder %v341, 4
        %vm422 = vcmp.eq.s32.totalorder %v342, 4
        %vm423 = vcmp.eq.s32.totalorder %v343, 4
        %vm424 = vcmp.eq.s32.totalorder %v344, 4
        %vm425 = vcmp.eq.s32.totalorder %v345, 4
        %v426 = vsel %vm418, 0.67, %v402
        %v427 = vsel %vm419, 0.67, %v403
        %v428 = vsel %vm420, 0.67, %v404
        %v429 = vsel %vm421, 0.67, %v405
        %v430 = vsel %vm422, 0.67, %v406
        %v431 = vsel %vm423, 0.67, %v407
        %v432 = vsel %vm424, 0.67, %v408
        %v433 = vsel %vm425, 0.67, %v409
        %v434 = vsel %vm418, 0.33, %v410
        %v435 = vsel %vm419, 0.33, %v411
        %v436 = vsel %vm420, 0.33, %v412
        %v437 = vsel %vm421, 0.33, %v413
        %v438 = vsel %vm422, 0.33, %v414
        %v439 = vsel %vm423, 0.33, %v415
        %v440 = vsel %vm424, 0.33, %v416
        %v441 = vsel %vm425, 0.33, %v417
        %vm442 = vcmp.eq.s32.totalorder %v338, 5
        %vm443 = vcmp.eq.s32.totalorder %v339, 5
        %vm444 = vcmp.eq.s32.totalorder %v340, 5
        %vm445 = vcmp.eq.s32.totalorder %v341, 5
        %vm446 = vcmp.eq.s32.totalorder %v342, 5
        %vm447 = vcmp.eq.s32.totalorder %v343, 5
        %vm448 = vcmp.eq.s32.totalorder %v344, 5
        %vm449 = vcmp.eq.s32.totalorder %v345, 5
        %v450 = vsel %vm442, 0.7, %v426
        %v451 = vsel %vm443, 0.7, %v427
        %v452 = vsel %vm444, 0.7, %v428
        %v453 = vsel %vm445, 0.7, %v429
        %v454 = vsel %vm446, 0.7, %v430
        %v455 = vsel %vm447, 0.7, %v431
        %v456 = vsel %vm448, 0.7, %v432
        %v457 = vsel %vm449, 0.7, %v433
        %v458 = vsel %vm442, 0.3, %v434
        %v459 = vsel %vm443, 0.3, %v435
        %v460 = vsel %vm444, 0.3, %v436
        %v461 = vsel %vm445, 0.3, %v437
        %v462 = vsel %vm446, 0.3, %v438
        %v463 = vsel %vm447, 0.3, %v439
        %v464 = vsel %vm448, 0.3, %v440
        %v465 = vsel %vm449, 0.3, %v441
        %vm466 = vcmp.eq.s32.totalorder %v338, 6
        %vm467 = vcmp.eq.s32.totalorder %v339, 6
        %vm468 = vcmp.eq.s32.totalorder %v340, 6
        %vm469 = vcmp.eq.s32.totalorder %v341, 6
        %vm470 = vcmp.eq.s32.totalorder %v342, 6
        %vm471 = vcmp.eq.s32.totalorder %v343, 6
        %vm472 = vcmp.eq.s32.totalorder %v344, 6
        %vm473 = vcmp.eq.s32.totalorder %v345, 6
        %v474 = vsel %vm466, 0.73, %v450
        %v475 = vsel %vm467, 0.73, %v451
        %v476 = vsel %vm468, 0.73, %v452
        %v477 = vsel %vm469, 0.73, %v453
        %v478 = vsel %vm470, 0.73, %v454
        %v479 = vsel %vm471, 0.73, %v455
        %v480 = vsel %vm472, 0.73, %v456
        %v481 = vsel %vm473, 0.73, %v457
        %v482 = vsel %vm466, 0.27, %v458
        %v483 = vsel %vm467, 0.27, %v459
        %v484 = vsel %vm468, 0.27, %v460
        %v485 = vsel %vm469, 0.27, %v461
        %v486 = vsel %vm470, 0.27, %v462
        %v487 = vsel %vm471, 0.27, %v463
        %v488 = vsel %vm472, 0.27, %v464
        %v489 = vsel %vm473, 0.27, %v465
        %v490 = vmul.f32 %v474, %v328
        %v491 = vmul.f32 %v475, %v329
        %v492 = vmul.f32 %v476, %v330
        %v493 = vmul.f32 %v477, %v331
        %v494 = vmul.f32 %v478, %v332
        %v495 = vmul.f32 %v479, %v333
        %v496 = vmul.f32 %v480, %v334
        %v497 = vmul.f32 %v481, %v335
        %v498 = vlog2.pop %v320
        %v499 = vmul.f32 %v498, 0.6931472
        %v500 = vlog2.pop %v321
        %v501 = vmul.f32 %v500, 0.6931472
        %v502 = vlog2.pop %v322
        %v503 = vmul.f32 %v502, 0.6931472
        %v504 = vlog2.pop %v323
        %v505 = vmul.f32 %v504, 0.6931472
        %v506 = vlog2.pop %v324
        %v507 = vmul.f32 %v506, 0.6931472
        %v508 = vlog2.pop %v325
        %v509 = vmul.f32 %v508, 0.6931472
        %v510 = vlog2.pop %v326
        %v511 = vmul.f32 %v510, 0.6931472
        %v512 = vlog2.pop %v327
        %v513 = vmul.f32 %v512, 0.6931472
        %v514 = vmul.f32 %v490, %v499
        %v515 = vmul.f32 %v491, %v501
        %v516 = vmul.f32 %v492, %v503
        %v517 = vmul.f32 %v493, %v505
        %v518 = vmul.f32 %v494, %v507
        %v519 = vmul.f32 %v495, %v509
        %v520 = vmul.f32 %v496, %v511
        %v521 = vmul.f32 %v497, %v513
        %v522 = vsub.f32 1.0, %v328
        %v523 = vsub.f32 1.0, %v329
        %v524 = vsub.f32 1.0, %v330
        %v525 = vsub.f32 1.0, %v331
        %v526 = vsub.f32 1.0, %v332
        %v527 = vsub.f32 1.0, %v333
        %v528 = vsub.f32 1.0, %v334
        %v529 = vsub.f32 1.0, %v335
        %v530 = vmul.f32 %v482, %v522
        %v531 = vmul.f32 %v483, %v523
        %v532 = vmul.f32 %v484, %v524
        %v533 = vmul.f32 %v485, %v525
        %v534 = vmul.f32 %v486, %v526
        %v535 = vmul.f32 %v487, %v527
        %v536 = vmul.f32 %v488, %v528
        %v537 = vmul.f32 %v489, %v529
        %v538 = vsub.f32 1.0, %v320
        %v539 = vsub.f32 1.0, %v321
        %v540 = vsub.f32 1.0, %v322
        %v541 = vsub.f32 1.0, %v323
        %v542 = vsub.f32 1.0, %v324
        %v543 = vsub.f32 1.0, %v325
        %v544 = vsub.f32 1.0, %v326
        %v545 = vsub.f32 1.0, %v327
        %v546 = vlog2.pop %v538
        %v547 = vmul.f32 %v546, 0.6931472
        %v548 = vlog2.pop %v539
        %v549 = vmul.f32 %v548, 0.6931472
        %v550 = vlog2.pop %v540
        %v551 = vmul.f32 %v550, 0.6931472
        %v552 = vlog2.pop %v541
        %v553 = vmul.f32 %v552, 0.6931472
        %v554 = vlog2.pop %v542
        %v555 = vmul.f32 %v554, 0.6931472
        %v556 = vlog2.pop %v543
        %v557 = vmul.f32 %v556, 0.6931472
        %v558 = vlog2.pop %v544
        %v559 = vmul.f32 %v558, 0.6931472
        %v560 = vlog2.pop %v545
        %v561 = vmul.f32 %v560, 0.6931472
        %v562 = vmul.f32 %v530, %v547
        %v563 = vmul.f32 %v531, %v549
        %v564 = vmul.f32 %v532, %v551
        %v565 = vmul.f32 %v533, %v553
        %v566 = vmul.f32 %v534, %v555
        %v567 = vmul.f32 %v535, %v557
        %v568 = vmul.f32 %v536, %v559
        %v569 = vmul.f32 %v537, %v561
        %v570 = vadd.f32 %v514, %v562
        %v571 = vadd.f32 %v515, %v563
        %v572 = vadd.f32 %v516, %v564
        %v573 = vadd.f32 %v517, %v565
        %v574 = vadd.f32 %v518, %v566
        %v575 = vadd.f32 %v519, %v567
        %v576 = vadd.f32 %v520, %v568
        %v577 = vadd.f32 %v521, %v569
        %v578 = vsub.f32 0.0, %v570
        %v579 = vsub.f32 0.0, %v571
        %v580 = vsub.f32 0.0, %v572
        %v581 = vsub.f32 0.0, %v573
        %v582 = vsub.f32 0.0, %v574
        %v583 = vsub.f32 0.0, %v575
        %v584 = vsub.f32 0.0, %v576
        %v585 = vsub.f32 0.0, %v577
        %586 = vst [vmem:[%s283] sm:$0xff] %v578
        %587 = vst [vmem:[%s283 + $0x8] sm:$0xff] %v579
        %588 = vst [vmem:[%s283 + $0x10] sm:$0xff] %v580
        %589 = vst [vmem:[%s283 + $0x18] sm:$0xff] %v581
        %590 = vst [vmem:[%s283 + $0x20] sm:$0xff] %v582
        %591 = vst [vmem:[%s283 + $0x28] sm:$0xff] %v583
        %592 = vst [vmem:[%s283 + $0x30] sm:$0xff] %v584
        %593 = vst [vmem:[%s283 + $0x38] sm:$0xff] %v585
        %s594 = sand.u32 %s109, 1
        %s595 = scalar_lea.sflag [#allocation4], %s594
        %s596 = sand.u32 %s109, 1
        %s597 = smul.addr %s596, 64
        %s598 = scalar_lea.vmem [#allocation8], %s597
        // Predicated region
        $region45: #{tpu_custom_call.1} parent=31 // pred_check
          %p599 = pneg %p119
        $region46: #{tpu_custom_call.1} parent=31 // pred_check_branch
          %601 = sbr.rel (%p599) target = $region48
        $region47: #{tpu_custom_call.1} parent=31 // pred_region
          %s602 = smul.u32 8, %s23
          %s603 = ssub.s32 12, %s602
          %p604 = scmp.lt.s32.totalorder %s603, 8
          %s605 = scalar_select %p604, %s603, 8
          %s606 = smul.u32 128, %s605
          %s608 = ssub.s32 1024, %s606
          %609 = vsyncadd %s595, %s608
          %p610 = scmp.ne.s32.totalorder 0, %s606
          %s611 = smul.addr %s602, 128
          %s612 = scalar_lea.hbm %s3, %s611
          %s613 = smul.u32 8, %s605
          %s614 = sshll.u32 %s598, 4
          %s615 = int_to_ptr.vmem [resolvable:$true] %s614
          %s616 = sshll.u32 %s613, 4
          %620 = dma.vmem_to_hbm [thread:$0]  (%p610), %s615, %s616, %s612, %s595, 128, 128, 8
        $region48: #{tpu_custom_call.1} parent=31 // pred_fallthru
          _
      $region32: #{tpu_custom_call.1} parent=5 // pred_fallthru
        _
      %p621 = scmp.le.s32.totalorder 2, %s18
      // Predicated region
      $region49: #{tpu_custom_call.1} parent=5 // pred_check
        %p622 = pneg %p621
      $region50: #{tpu_custom_call.1} parent=5 // pred_check_branch
        %624 = sbr.rel (%p622) target = $region52
      $region51: #{tpu_custom_call.1} parent=5 // pred_region
        %s625 = ssub.s32 %s18, 2
        // Predicated region
        $region53: #{tpu_custom_call.1} parent=51 // pred_check
          %p626 = pneg %p125
        $region54: #{tpu_custom_call.1} parent=51 // pred_check_branch
          %628 = sbr.rel (%p626) target = $region56
        $region55: #{tpu_custom_call.1} parent=51 // pred_region
          %s629 = sand.u32 %s110, 1
          %s630 = scalar_lea.sflag [#allocation4], %s629
          %s631 = sand.u32 %s110, 1
          %s632 = smul.addr %s631, 64
          %s633 = scalar_lea.vmem [#allocation8], %s632
          %634 = dma.done %s630, 1024
        $region56: #{tpu_custom_call.1} parent=51 // pred_fallthru
          _
      $region52: #{tpu_custom_call.1} parent=5 // pred_fallthru
        _
    $region6: #{tpu_custom_call.1} parent=1 // loop_footer
      %s22 = sadd.s32 1, %s18
    $region7: #{tpu_custom_call.1} parent=1 // loop_footer_branch
      %17 = sbr.rel target = $region3
    $region8: #{tpu_custom_call.1} parent=1 // loop_exit
      _
    %635 = vsyncpa [#allocation3], 1
    %s636 = scalar_lea.sflag [#allocation3], 1
    %637 = vsyncpa %s636, 1
    %638 = vsyncpa [#allocation6], 1
    %s639 = scalar_lea.sflag [#allocation6], 1
    %640 = vsyncpa %s639, 1
    %641 = vsyncpa [#allocation4], 1
    %s642 = scalar_lea.sflag [#allocation4], 1
    %643 = vsyncpa %s642, 1

</llo_original>
